<compile_context>
chip_gen: v7x
topology: tpu7x:2x2x1
jax: 0.10.0
libtpu: 0.0.40
codegen_flags: <defaults>
</compile_context>

<pallas_src>
import jax
import jax.numpy as jnp
from jax.experimental import pallas as pl
from jax.experimental.pallas import tpu as pltpu


def _round_up(n, m):
    return ((n + m - 1) // m) * m


def _mlp_kernel(x_ref, w1_ref, b1_ref, w2_ref, b2_ref, w3_ref, b3_ref, o_ref):
    """One (TB, D) batch tile of the 3-layer MLP, entirely in VMEM."""
    x = x_ref[...]  # (TB, D) f32

    # fc1 + ReLU: (TB, D) x (16, D)^T -> (TB, 16)
    h1 = jnp.einsum("bd,od->bo", x, w1_ref[...],
                    preferred_element_type=jnp.float32)
    h1 = jnp.maximum(h1 + b1_ref[...], 0.0)

    # fc2 + ReLU, computed transposed so the batch lands on lanes:
    # (8, 16) x (TB, 16)^T -> (8, TB)
    h2t = jnp.einsum("ok,bk->ob", w2_ref[...], h1,
                     preferred_element_type=jnp.float32)
    h2t = jnp.maximum(h2t + b2_ref[...], 0.0)

    # output + Sigmoid: (1, 8) @ (8, TB) -> (1, TB)   (lane-dense store)
    h3t = jnp.dot(w3_ref[...], h2t, preferred_element_type=jnp.float32)
    o_ref[...] = jax.nn.sigmoid(h3t + b3_ref[...]).astype(o_ref.dtype)


def _pick_batch_tile(B, D, itemsize=4, max_tile_bytes=4 << 20, tb_cap=2048):
    """Largest multiple-of-128 batch tile whose input slab stays under budget."""
    tb = max(128, (max_tile_bytes // max(D * itemsize, 1)) // 128 * 128)
    tb = min(tb, tb_cap)
    tb = min(tb, _round_up(B, 128))
    return tb


def net_forward(x, params, tb=None):
    """x: (B, D) float32. params: PyTorch-convention shapes. Returns (B, 1)."""
    B, D = x.shape
    TB = _pick_batch_tile(B, D) if tb is None else max(128, _round_up(tb, 128))
    B_pad = _round_up(B, TB)
    grid = (B_pad // TB,)

    x = x.astype(jnp.float32)
    if B_pad != B:
        x = jnp.pad(x, ((0, B_pad - B), (0, 0)))

    w1 = params["fc1_w"].astype(jnp.float32)                 # (16, D)
    b1 = params["fc1_b"].reshape(1, 16).astype(jnp.float32)  # (1, 16)
    w2 = params["fc2_w"].astype(jnp.float32)                 # (8, 16)
    b2 = params["fc2_b"].reshape(8, 1).astype(jnp.float32)   # (8, 1)
    w3 = params["out_w"].astype(jnp.float32)                 # (1, 8)
    b3 = params["out_b"].reshape(1, 1).astype(jnp.float32)   # (1, 1)

    # Constant index_map -> weight DMAs are issued once and skipped afterwards.
    const = lambda shape: pl.BlockSpec(shape, lambda i, _s=shape: tuple(0 for _ in _s))

    flops = 2 * B_pad * (D * 16 + 16 * 8 + 8 * 1)
    bytes_accessed = 4 * (B_pad * D + B_pad + 16 * D + 16 + 8 * 16 + 8 + 8 + 1)

    out = pl.pallas_call(
        _mlp_kernel,
        out_shape=jax.ShapeDtypeStruct((1, B_pad), jnp.float32),
        grid_spec=pltpu.PrefetchScalarGridSpec(
            num_scalar_prefetch=0,
            grid=grid,
            in_specs=[
                pl.BlockSpec((TB, D), lambda i: (i, 0)),   # x: batch-tiled
                const(w1.shape), const(b1.shape),
                const(w2.shape), const(b2.shape),
                const(w3.shape), const(b3.shape),
            ],
            out_specs=pl.BlockSpec((1, TB), lambda i: (0, i)),  # lane-dense
        ),
        compiler_params=pltpu.CompilerParams(
            dimension_semantics=("parallel",),
        ),
        cost_estimate=pl.CostEstimate(
            flops=flops, transcendentals=B_pad, bytes_accessed=bytes_accessed),
    )(x, w1, b1, w2, b2, w3, b3)

    return out[0, :B][:, None]


def init_params(key, input_dim):
    """Deterministic synthetic init matching nn.Linear shapes (PyTorch convention)."""
    ks = jax.random.split(key, 6)

    def uniform(k, shape, fan_in):
        bound = 1.0 / jnp.sqrt(fan_in)
        return jax.random.uniform(k, shape, jnp.float32, -bound, bound)

    return {
        "fc1_w": uniform(ks[0], (16, input_dim), input_dim),
        "fc1_b": uniform(ks[1], (16,), input_dim),
        "fc2_w": uniform(ks[2], (8, 16), 16),
        "fc2_b": uniform(ks[3], (8,), 16),
        "out_w": uniform(ks[4], (1, 8), 8),
        "out_b": uniform(ks[5], (1,), 8),
    }


def _reference(x, p):
    h1 = jnp.maximum(x @ p["fc1_w"].T + p["fc1_b"], 0.0)
    h2 = jnp.maximum(h1 @ p["fc2_w"].T + p["fc2_b"], 0.0)
    return jax.nn.sigmoid(h2 @ p["out_w"].T + p["out_b"])


if __name__ == "__main__":
    key = jax.random.PRNGKey(0)
    k_x, k_p, k_x2 = jax.random.split(key, 3)

    D = 32
    params = init_params(k_p, D)

    # Small batch: single grid step (8 rows padded to the 128-row tile).
    x_small = jax.random.normal(k_x, (8, D), jnp.float32)
    out_small = jax.block_until_ready(net_forward(x_small, params))
    ref_small = _reference(x_small, params)
    assert out_small.shape == (8, 1)
    assert jnp.allclose(out_small, ref_small, atol=1e-4, rtol=1e-4), (
        out_small, ref_small)

    # Ragged batch with an explicit 128-row tile: 3 pipelined grid steps.
    x_big = jax.random.normal(k_x2, (300, D), jnp.float32)
    out_big = jax.block_until_ready(net_forward(x_big, params, tb=128))
    ref_big = _reference(x_big, params)
    assert out_big.shape == (300, 1)
    assert jnp.allclose(out_big, ref_big, atol=1e-4, rtol=1e-4), (
        out_big, ref_big)

    print("KERNEL_OK")
</pallas_src>

<mosaic_0001>
module attributes {stable_mosaic.version = 11 : i64} {
  func.func @_mlp_kernel(%arg0: i32, %arg1: memref<128x32xf32, #tpu.memory_space<vmem>>, %arg2: memref<16x32xf32, #tpu.memory_space<vmem>>, %arg3: memref<1x16xf32, #tpu.memory_space<vmem>>, %arg4: memref<8x16xf32, #tpu.memory_space<vmem>>, %arg5: memref<8x1xf32, #tpu.memory_space<vmem>>, %arg6: memref<1x8xf32, #tpu.memory_space<vmem>>, %arg7: memref<1x1xf32, #tpu.memory_space<vmem>>, %arg8: memref<1x128xf32, #tpu.memory_space<vmem>>) attributes {dimension_semantics = [#tpu.dimension_semantics<parallel>], iteration_bounds = array<i64: 1>, scalar_prefetch = 0 : i64, scratch_operands = 0 : i64, tpu.core_type = #tpu.core_type<tc>, window_params = [{transform_indices = @transform_0, window_bounds = array<i64: 128, 32>}, {pipeline_mode = #tpu.pipeline_mode<synchronous>, transform_indices = @transform_1, window_bounds = array<i64: 16, 32>}, {pipeline_mode = #tpu.pipeline_mode<synchronous>, transform_indices = @transform_2, window_bounds = array<i64: 1, 16>}, {pipeline_mode = #tpu.pipeline_mode<synchronous>, transform_indices = @transform_3, window_bounds = array<i64: 8, 16>}, {pipeline_mode = #tpu.pipeline_mode<synchronous>, transform_indices = @transform_4, window_bounds = array<i64: 8, 1>}, {pipeline_mode = #tpu.pipeline_mode<synchronous>, transform_indices = @transform_5, window_bounds = array<i64: 1, 8>}, {pipeline_mode = #tpu.pipeline_mode<synchronous>, transform_indices = @transform_6, window_bounds = array<i64: 1, 1>}, {transform_indices = @transform_7, window_bounds = array<i64: 1, 128>}]} {
    %c0 = arith.constant 0 : index
    %c0_0 = arith.constant 0 : index
    %0 = vector.load %arg1[%c0, %c0_0] : memref<128x32xf32, #tpu.memory_space<vmem>>, vector<128x32xf32>
    %c0_1 = arith.constant 0 : index
    %c0_2 = arith.constant 0 : index
    %1 = vector.load %arg2[%c0_1, %c0_2] : memref<16x32xf32, #tpu.memory_space<vmem>>, vector<16x32xf32>
    "tpu.trace_start"() <{level = 10 : i32, message = "bd,od->bo"}> : () -> ()
    %cst = arith.constant dense<0.000000e+00> : vector<128x16xf32>
    %2 = tpu.matmul %0, %1, %cst {dimension_numbers = #tpu.dot_dimension_numbers<[1], [1], [0], [0], [0, 0, 1, 0], [], []>} : vector<128x32xf32>, vector<16x32xf32>, vector<128x16xf32> -> vector<128x16xf32>
    "tpu.trace_stop"() : () -> ()
    %c0_3 = arith.constant 0 : index
    %c0_4 = arith.constant 0 : index
    %3 = vector.load %arg3[%c0_3, %c0_4] : memref<1x16xf32, #tpu.memory_space<vmem>>, vector<1x16xf32>
    %4 = vector.broadcast %3 : vector<1x16xf32> to vector<128x16xf32>
    %5 = arith.addf %2, %4 : vector<128x16xf32>
    %cst_5 = arith.constant 0.000000e+00 : f32
    %6 = vector.broadcast %cst_5 : f32 to vector<128x16xf32>
    %7 = arith.maximumf %5, %6 : vector<128x16xf32>
    %c0_6 = arith.constant 0 : index
    %c0_7 = arith.constant 0 : index
    %8 = vector.load %arg4[%c0_6, %c0_7] : memref<8x16xf32, #tpu.memory_space<vmem>>, vector<8x16xf32>
    "tpu.trace_start"() <{level = 10 : i32, message = "ok,bk->ob"}> : () -> ()
    %cst_8 = arith.constant dense<0.000000e+00> : vector<8x128xf32>
    %9 = tpu.matmul %8, %7, %cst_8 {dimension_numbers = #tpu.dot_dimension_numbers<[1], [1], [0], [0], [0, 0, 1, 0], [], []>} : vector<8x16xf32>, vector<128x16xf32>, vector<8x128xf32> -> vector<8x128xf32>
    "tpu.trace_stop"() : () -> ()
    %c0_9 = arith.constant 0 : index
    %c0_10 = arith.constant 0 : index
    %10 = vector.load %arg5[%c0_9, %c0_10] : memref<8x1xf32, #tpu.memory_space<vmem>>, vector<8x1xf32>
    %11 = vector.broadcast %10 : vector<8x1xf32> to vector<8x128xf32>
    %12 = arith.addf %9, %11 : vector<8x128xf32>
    %cst_11 = arith.constant 0.000000e+00 : f32
    %13 = vector.broadcast %cst_11 : f32 to vector<8x128xf32>
    %14 = arith.maximumf %12, %13 : vector<8x128xf32>
    %c0_12 = arith.constant 0 : index
    %c0_13 = arith.constant 0 : index
    %15 = vector.load %arg6[%c0_12, %c0_13] : memref<1x8xf32, #tpu.memory_space<vmem>>, vector<1x8xf32>
    %cst_14 = arith.constant dense<0.000000e+00> : vector<1x128xf32>
    %16 = tpu.matmul %15, %14, %cst_14 {dimension_numbers = #tpu.dot_dimension_numbers<[1], [0], [0], [1], [0, 0, 1, 1], [], []>} : vector<1x8xf32>, vector<8x128xf32>, vector<1x128xf32> -> vector<1x128xf32>
    %c0_15 = arith.constant 0 : index
    %c0_16 = arith.constant 0 : index
    %17 = vector.load %arg7[%c0_15, %c0_16] : memref<1x1xf32, #tpu.memory_space<vmem>>, vector<1x1xf32>
    %18 = vector.broadcast %17 : vector<1x1xf32> to vector<1x128xf32>
    %19 = arith.addf %16, %18 : vector<1x128xf32>
    %20 = arith.negf %19 : vector<1x128xf32>
    %21 = math.exp %20 : vector<1x128xf32>
    %cst_17 = arith.constant 1.000000e+00 : f32
    %22 = vector.broadcast %cst_17 : f32 to vector<1x128xf32>
    %23 = arith.addf %22, %21 : vector<1x128xf32>
    %24 = arith.divf %22, %23 : vector<1x128xf32>
    %c0_18 = arith.constant 0 : index
    %c0_19 = arith.constant 0 : index
    %25 = vector.load %arg8[%c0_18, %c0_19] : memref<1x128xf32, #tpu.memory_space<vmem>>, vector<1x128xf32>
    tpu.vector_store %arg8[%c0_18, %c0_19], %24 {strides = array<i32>} : memref<1x128xf32, #tpu.memory_space<vmem>>, vector<1x128xf32>,
    return
  }
  func.func @transform_0(%arg0: i32) -> (i32, i32) {
    %c0_i32 = arith.constant 0 : i32
    %c0_i32_0 = arith.constant 0 : i32
    return %arg0, %c0_i32 : i32, i32
  }
  func.func @transform_1(%arg0: i32) -> (i32, i32) {
    %c0_i32 = arith.constant 0 : i32
    %c0_i32_0 = arith.constant 0 : i32
    %c0_i32_1 = arith.constant 0 : i32
    return %c0_i32, %c0_i32_0 : i32, i32
  }
  func.func @transform_2(%arg0: i32) -> (i32, i32) {
    %c0_i32 = arith.constant 0 : i32
    %c0_i32_0 = arith.constant 0 : i32
    %c0_i32_1 = arith.constant 0 : i32
    return %c0_i32, %c0_i32_0 : i32, i32
  }
  func.func @transform_3(%arg0: i32) -> (i32, i32) {
    %c0_i32 = arith.constant 0 : i32
    %c0_i32_0 = arith.constant 0 : i32
    %c0_i32_1 = arith.constant 0 : i32
    return %c0_i32, %c0_i32_0 : i32, i32
  }
  func.func @transform_4(%arg0: i32) -> (i32, i32) {
    %c0_i32 = arith.constant 0 : i32
    %c0_i32_0 = arith.constant 0 : i32
    %c0_i32_1 = arith.constant 0 : i32
    return %c0_i32, %c0_i32_0 : i32, i32
  }
  func.func @transform_5(%arg0: i32) -> (i32, i32) {
    %c0_i32 = arith.constant 0 : i32
    %c0_i32_0 = arith.constant 0 : i32
    %c0_i32_1 = arith.constant 0 : i32
    return %c0_i32, %c0_i32_0 : i32, i32
  }
  func.func @transform_6(%arg0: i32) -> (i32, i32) {
    %c0_i32 = arith.constant 0 : i32
    %c0_i32_0 = arith.constant 0 : i32
    %c0_i32_1 = arith.constant 0 : i32
    return %c0_i32, %c0_i32_0 : i32, i32
  }
  func.func @transform_7(%arg0: i32) -> (i32, i32) {
    %c0_i32 = arith.constant 0 : i32
    %c0_i32_0 = arith.constant 0 : i32
    return %c0_i32, %arg0 : i32, i32
  }
}

</mosaic_0001>

<llo_original>
// kernel: tpu_custom_call.1
$region0: #{tpu_custom_call.1}
  #allocation0 [shape = 'u32[]', space=smem, size = 0x4, offset = 0x4, fixed_abs, tag = 'smem constant byte address 0x4 - core index']
  #allocation1 [shape = 'u32[144,128]{1,0:T(1,128)}', space=vmem, size = 0x12000, scoped, tag = 'internal scratch']
  #allocation2 [shape = 'f32[1,1]{1,0:T(1,128)S(1)}', space=vmem, size = 0x200, scoped, tag = 'scoped memory for tpu_custom_call.1']
  %s0 = inlined_call_operand.vmem [shape: f32[128,32], index: 0, kind: input, shape index: {}]
  %s1 = inlined_call_operand.vmem [shape: f32[16,32], index: 1, kind: input, shape index: {}]
  %s2 = inlined_call_operand.vmem [shape: f32[1,16], index: 2, kind: input, shape index: {}]
  %s3 = inlined_call_operand.vmem [shape: f32[8,16], index: 3, kind: input, shape index: {}]
  %s4 = inlined_call_operand.vmem [shape: f32[8,1], index: 4, kind: input, shape index: {}]
  %s5 = inlined_call_operand.vmem [shape: f32[1,8], index: 5, kind: input, shape index: {}]
  %s6 = inlined_call_operand.<no memory space> [shape: f32[1,1], index: 6, kind: input, shape index: {}]
  %s7 = inlined_call_operand.hbm [shape: f32[1,128], index: 7, kind: output, shape index: {}]
  %s8 = sld [smem:[#allocation0]]
  $region38: #{tpu_custom_call.1} parent=0
    _
  %s10 = ssub.s32 1, %s8
  %s11 = scalar_select 0, %s10, %s8
  %v12 = vstv %s6
  %13 = vst [vmem:[#allocation2] sm:$0x1] %v12
  $region1: #{tpu_custom_call.1} parent=0
    #allocation3 [shape = 'u8[512]{0}', space=vmem, size = 0x400, scoped, tag = 'output window, operand 0, single buffered']
    #allocation4 [shape = 's32[1]{0}', space=sflag, size = 0x4, scoped, tag = 'scoped memory for tpu_custom_call.1']
    %14 = vsyncpa [#allocation4], 0
    // Predicated region
    $region2: #{tpu_custom_call.1} parent=1 // pred_check
      _
    $region3: #{tpu_custom_call.1} parent=1 // pred_check_branch
      %16 = sbr.rel (0) target = $region5
    $region4: #{tpu_custom_call.1} parent=1 // pred_region
      _
    $region5: #{tpu_custom_call.1} parent=1 // pred_fallthru
      _
    // Predicated region
    $region6: #{tpu_custom_call.1} parent=1 // pred_check
      _
    $region7: #{tpu_custom_call.1} parent=1 // pred_check_branch
      %18 = sbr.rel (0) target = $region9
    $region8: #{tpu_custom_call.1} parent=1 // pred_region
      _
    $region9: #{tpu_custom_call.1} parent=1 // pred_fallthru
      _
    // Predicated region
    $region10: #{tpu_custom_call.1} parent=1 // pred_check
      _
    $region11: #{tpu_custom_call.1} parent=1 // pred_check_branch
      %20 = sbr.rel (0) target = $region13
    $region12: #{tpu_custom_call.1} parent=1 // pred_region
      _
    $region13: #{tpu_custom_call.1} parent=1 // pred_fallthru
      _
    // Predicated region
    $region14: #{tpu_custom_call.1} parent=1 // pred_check
      _
    $region15: #{tpu_custom_call.1} parent=1 // pred_check_branch
      %22 = sbr.rel (0) target = $region17
    $region16: #{tpu_custom_call.1} parent=1 // pred_region
      _
    $region17: #{tpu_custom_call.1} parent=1 // pred_fallthru
      _
    // Predicated region
    $region18: #{tpu_custom_call.1} parent=1 // pred_check
      _
    $region19: #{tpu_custom_call.1} parent=1 // pred_check_branch
      %24 = sbr.rel (0) target = $region21
    $region20: #{tpu_custom_call.1} parent=1 // pred_region
      _
    $region21: #{tpu_custom_call.1} parent=1 // pred_fallthru
      _
    // Predicated region
    $region22: #{tpu_custom_call.1} parent=1 // pred_check
      _
    $region23: #{tpu_custom_call.1} parent=1 // pred_check_branch
      %26 = sbr.rel (0) target = $region25
    $region24: #{tpu_custom_call.1} parent=1 // pred_region
      _
    $region25: #{tpu_custom_call.1} parent=1 // pred_fallthru
      _
    // Predicated region
    $region26: #{tpu_custom_call.1} parent=1 // pred_check
      _
    $region27: #{tpu_custom_call.1} parent=1 // pred_check_branch
      %28 = sbr.rel (0) target = $region29
    $region28: #{tpu_custom_call.1} parent=1 // pred_region
      _
    $region29: #{tpu_custom_call.1} parent=1 // pred_fallthru
      _
    %v29 = vld [vmem:[%s0] sm:$0xff]
    %v30 = vld [vmem:[%s0 + $0x8] sm:$0xff]
    %v31 = vld [vmem:[%s0 + $0x10] sm:$0xff]
    %v32 = vld [vmem:[%s0 + $0x18] sm:$0xff]
    %v33 = vld [vmem:[%s0 + $0x20] sm:$0xff]
    %v34 = vld [vmem:[%s0 + $0x28] sm:$0xff]
    %v35 = vld [vmem:[%s0 + $0x30] sm:$0xff]
    %v36 = vld [vmem:[%s0 + $0x38] sm:$0xff]
    %v37 = vld [vmem:[%s0 + $0x40] sm:$0xff]
    %v38 = vld [vmem:[%s0 + $0x48] sm:$0xff]
    %v39 = vld [vmem:[%s0 + $0x50] sm:$0xff]
    %v40 = vld [vmem:[%s0 + $0x58] sm:$0xff]
    %v41 = vld [vmem:[%s0 + $0x60] sm:$0xff]
    %v42 = vld [vmem:[%s0 + $0x68] sm:$0xff]
    %v43 = vld [vmem:[%s0 + $0x70] sm:$0xff]
    %v44 = vld [vmem:[%s0 + $0x78] sm:$0xff]
    %v45 = vld [vmem:[%s1] sm:$0xff]
    %v46 = vld [vmem:[%s1 + $0x8] sm:$0xff]
    %v47 = vld [vmem:[%s2] sm:$0x1]
    %v49 = vlaneseq
    %v50 = vshrl.u32 %v49, 7
    %v51 = vsub.s32 0, %v50
    %v52 = vrot.slane %v47, %v51
    %vm54 = vcmask 261120
    %v56 = vsel %vm54, %v29, 0
    %v59 = vsel %vm54, %v30, 0
    %v62 = vsel %vm54, %v31, 0
    %v65 = vsel %vm54, %v32, 0
    %v68 = vsel %vm54, %v33, 0
    %v71 = vsel %vm54, %v34, 0
    %v74 = vsel %vm54, %v35, 0
    %v77 = vsel %vm54, %v36, 0
    %v80 = vsel %vm54, %v37, 0
    %v83 = vsel %vm54, %v38, 0
    %v86 = vsel %vm54, %v39, 0
    %v89 = vsel %vm54, %v40, 0
    %v92 = vsel %vm54, %v41, 0
    %v95 = vsel %vm54, %v42, 0
    %v98 = vsel %vm54, %v43, 0
    %v101 = vsel %vm54, %v44, 0
    %v104 = vsel %vm54, %v45, 0
    %v107 = vsel %vm54, %v46, 0
    %109 = vmatprep.subr.mxu0 0.0
    %110 = vmatpush1.xpose.msra.mxu0 %v104
    %111 = vmatprep.subr.mxu0 0.0
    %112 = vmatpush1.xpose.msra.mxu0 %v107
    %113 = vmatprep.subr.mxu0 0.0
    %114 = vmatpush1.xpose.msra.mxu0 0.0
    %115 = vmatprep.subr.mxu0 0.0
    %116 = vmatpush1.xpose.msra.mxu0 0.0
    %117 = vmatprep.subr.mxu0 0.0
    %118 = vmatpush1.xpose.msra.mxu0 0.0
    %119 = vmatprep.subr.mxu0 0.0
    %120 = vmatpush1.xpose.msra.mxu0 0.0
    %121 = vmatprep.subr.mxu0 0.0
    %122 = vmatpush1.xpose.msra.mxu0 0.0
    %123 = vmatprep.subr.mxu0 0.0
    %124 = vmatpush1.xpose.msra.mxu0 0.0
    %125 = vmatprep.subr.mxu0 0.0
    %126 = vmatpush1.xpose.msra.mxu0 0.0
    %127 = vmatprep.subr.mxu0 0.0
    %128 = vmatpush1.xpose.msra.mxu0 0.0
    %129 = vmatprep.subr.mxu0 0.0
    %130 = vmatpush1.xpose.msra.mxu0 0.0
    %131 = vmatprep.subr.mxu0 0.0
    %132 = vmatpush1.xpose.msra.mxu0 0.0
    %133 = vmatprep.subr.mxu0 0.0
    %134 = vmatpush1.xpose.msra.mxu0 0.0
    %135 = vmatprep.subr.mxu0 0.0
    %136 = vmatpush1.xpose.msra.mxu0 0.0
    %137 = vmatprep.subr.mxu0 0.0
    %138 = vmatpush1.xpose.msra.mxu0 0.0
    %139 = vmatprep.subr.mxu0 0.0
    %140 = vmatpush1.xpose.msra.mxu0 0.0
    %141 = vmatprep.subr.mxu0 0.0
    %142 = vmatpush1.xpose.msra.mxu0 0.0
    %143 = vmatprep.subr.mxu0 0.0
    %144 = vmatpush1.xpose.msra.mxu0 0.0
    %145 = vmatprep.subr.mxu0 0.0
    %146 = vmatpush1.xpose.msra.mxu0 0.0
    %147 = vmatprep.subr.mxu0 0.0
    %148 = vmatpush1.xpose.msra.mxu0 0.0
    %149 = vmatprep.subr.mxu0 0.0
    %150 = vmatpush1.xpose.msra.mxu0 0.0
    %151 = vmatprep.subr.mxu0 0.0
    %152 = vmatpush1.xpose.msra.mxu0 0.0
    %153 = vmatprep.subr.mxu0 0.0
    %154 = vmatpush1.xpose.msra.mxu0 0.0
    %155 = vmatprep.subr.mxu0 0.0
    %156 = vmatpush1.xpose.msra.mxu0 0.0
    %157 = vmatprep.subr.mxu0 0.0
    %158 = vmatpush1.xpose.msra.mxu0 0.0
    %159 = vmatprep.subr.mxu0 0.0
    %160 = vmatpush1.xpose.msra.mxu0 0.0
    %161 = vmatprep.subr.mxu0 0.0
    %162 = vmatpush1.xpose.msra.mxu0 0.0
    %163 = vmatprep.subr.mxu0 0.0
    %164 = vmatpush1.xpose.msra.mxu0 0.0
    %165 = vmatprep.subr.mxu0 0.0
    %166 = vmatpush1.xpose.msra.mxu0 0.0
    %167 = vmatprep.subr.mxu0 0.0
    %168 = vmatpush1.xpose.msra.mxu0 0.0
    %169 = vmatprep.subr.mxu0 0.0
    %170 = vmatpush1.xpose.msra.mxu0 0.0
    %171 = vmatprep.subr.mxu0 0.0
    %172 = vmatpush1.xpose.msra.mxu0 0.0
    %173 = vmatprep.mubr.f32.mxu0 0.0
    %174 = vmatmul.mubr.f32.gmra.mrb[0].mxu0 %v56
    %v175 = vpop.f32.mrb[0].mxu0
    %v176 = vadd.f32 %v52, %v175
    %v177 = vpop.f32.mrb[0].mxu0
    %178 = vmatprep.mubr.f32.mxu0 0.0
    %179 = vmatmul.mubr.f32.gmra.mrb[0].mxu0 %v59
    %v180 = vpop.f32.mrb[0].mxu0
    %v181 = vadd.f32 %v52, %v180
    %v182 = vpop.f32.mrb[0].mxu0
    %183 = vmatprep.mubr.f32.mxu0 0.0
    %184 = vmatmul.mubr.f32.gmra.mrb[0].mxu0 %v62
    %v185 = vpop.f32.mrb[0].mxu0
    %v186 = vadd.f32 %v52, %v185
    %v187 = vpop.f32.mrb[0].mxu0
    %188 = vmatprep.mubr.f32.mxu0 0.0
    %189 = vmatmul.mubr.f32.gmra.mrb[0].mxu0 %v65
    %v190 = vpop.f32.mrb[0].mxu0
    %v191 = vadd.f32 %v52, %v190
    %v192 = vpop.f32.mrb[0].mxu0
    %193 = vmatprep.mubr.f32.mxu0 0.0
    %194 = vmatmul.mubr.f32.gmra.mrb[0].mxu0 %v68
    %v195 = vpop.f32.mrb[0].mxu0
    %v196 = vadd.f32 %v52, %v195
    %v197 = vpop.f32.mrb[0].mxu0
    %198 = vmatprep.mubr.f32.mxu0 0.0
    %199 = vmatmul.mubr.f32.gmra.mrb[0].mxu0 %v71
    %v200 = vpop.f32.mrb[0].mxu0
    %v201 = vadd.f32 %v52, %v200
    %v202 = vpop.f32.mrb[0].mxu0
    %203 = vmatprep.mubr.f32.mxu0 0.0
    %204 = vmatmul.mubr.f32.gmra.mrb[0].mxu0 %v74
    %v205 = vpop.f32.mrb[0].mxu0
    %v206 = vadd.f32 %v52, %v205
    %v207 = vpop.f32.mrb[0].mxu0
    %208 = vmatprep.mubr.f32.mxu0 0.0
    %209 = vmatmul.mubr.f32.gmra.mrb[0].mxu0 %v77
    %v210 = vpop.f32.mrb[0].mxu0
    %v211 = vadd.f32 %v52, %v210
    %v212 = vpop.f32.mrb[0].mxu0
    %213 = vmatprep.mubr.f32.mxu0 0.0
    %214 = vmatmul.mubr.f32.gmra.mrb[0].mxu0 %v80
    %v215 = vpop.f32.mrb[0].mxu0
    %v216 = vadd.f32 %v52, %v215
    %v217 = vpop.f32.mrb[0].mxu0
    %218 = vmatprep.mubr.f32.mxu0 0.0
    %219 = vmatmul.mubr.f32.gmra.mrb[0].mxu0 %v83
    %v220 = vpop.f32.mrb[0].mxu0
    %v221 = vadd.f32 %v52, %v220
    %v222 = vpop.f32.mrb[0].mxu0
    %223 = vmatprep.mubr.f32.mxu0 0.0
    %224 = vmatmul.mubr.f32.gmra.mrb[0].mxu0 %v86
    %v225 = vpop.f32.mrb[0].mxu0
    %v226 = vadd.f32 %v52, %v225
    %v227 = vpop.f32.mrb[0].mxu0
    %228 = vmatprep.mubr.f32.mxu0 0.0
    %229 = vmatmul.mubr.f32.gmra.mrb[0].mxu0 %v89
    %v230 = vpop.f32.mrb[0].mxu0
    %v231 = vadd.f32 %v52, %v230
    %v232 = vpop.f32.mrb[0].mxu0
    %233 = vmatprep.mubr.f32.mxu0 0.0
    %234 = vmatmul.mubr.f32.gmra.mrb[0].mxu0 %v92
    %v235 = vpop.f32.mrb[0].mxu0
    %v236 = vadd.f32 %v52, %v235
    %v237 = vpop.f32.mrb[0].mxu0
    %238 = vmatprep.mubr.f32.mxu0 0.0
    %239 = vmatmul.mubr.f32.gmra.mrb[0].mxu0 %v95
    %v240 = vpop.f32.mrb[0].mxu0
    %v241 = vadd.f32 %v52, %v240
    %v242 = vpop.f32.mrb[0].mxu0
    %243 = vmatprep.mubr.f32.mxu0 0.0
    %244 = vmatmul.mubr.f32.gmra.mrb[0].mxu0 %v98
    %v245 = vpop.f32.mrb[0].mxu0
    %v246 = vadd.f32 %v52, %v245
    %v247 = vpop.f32.mrb[0].mxu0
    %248 = vmatprep.mubr.f32.mxu0 0.0
    %249 = vmatmul.mubr.f32.gmra.mrb[0].mxu0 %v101
    %v250 = vpop.f32.mrb[0].mxu0
    %v251 = vadd.f32 %v52, %v250
    %v252 = vpop.f32.mrb[0].mxu0
    %253 = vdwg.mxu0
    %v254 = vmax.f32 %v176, 0.0
    %v255 = vmax.f32 %v181, 0.0
    %v256 = vmax.f32 %v186, 0.0
    %v257 = vmax.f32 %v191, 0.0
    %v258 = vmax.f32 %v196, 0.0
    %v259 = vmax.f32 %v201, 0.0
    %v260 = vmax.f32 %v206, 0.0
    %v261 = vmax.f32 %v211, 0.0
    %v262 = vmax.f32 %v216, 0.0
    %v263 = vmax.f32 %v221, 0.0
    %v264 = vmax.f32 %v226, 0.0
    %v265 = vmax.f32 %v231, 0.0
    %v266 = vmax.f32 %v236, 0.0
    %v267 = vmax.f32 %v241, 0.0
    %v268 = vmax.f32 %v246, 0.0
    %v269 = vmax.f32 %v251, 0.0
    %v270 = vld [vmem:[%s3] sm:$0xff]
    %v271 = vld [vmem:[%s4] sm:$0xff]
    %273 = vset.pattern.permute.xlu0 0
    %274 = vperm.xlu0 %273, %v271
    %v275 = vpop.permute.xlu0 %274
    %vm277 = vcmask 130048
    %v279 = vsel %vm277, %v270, 0
    %v282 = vsel %vm277, %v254, 0
    %v285 = vsel %vm277, %v255, 0
    %v288 = vsel %vm277, %v256, 0
    %v291 = vsel %vm277, %v257, 0
    %v294 = vsel %vm277, %v258, 0
    %v297 = vsel %vm277, %v259, 0
    %v300 = vsel %vm277, %v260, 0
    %v303 = vsel %vm277, %v261, 0
    %v306 = vsel %vm277, %v262, 0
    %v309 = vsel %vm277, %v263, 0
    %v312 = vsel %vm277, %v264, 0
    %v315 = vsel %vm277, %v265, 0
    %v318 = vsel %vm277, %v266, 0
    %v321 = vsel %vm277, %v267, 0
    %v324 = vsel %vm277, %v268, 0
    %v327 = vsel %vm277, %v269, 0
    %329 = vmatprep.subr.mxu0 0.0
    %330 = vmatpush1.xpose.msra.mxu0 %v282
    %331 = vmatprep.subr.mxu0 0.0
    %332 = vmatpush1.xpose.msra.mxu0 %v285
    %333 = vmatprep.subr.mxu0 0.0
    %334 = vmatpush1.xpose.msra.mxu0 %v288
    %335 = vmatprep.subr.mxu0 0.0
    %336 = vmatpush1.xpose.msra.mxu0 %v291
    %337 = vmatprep.subr.mxu0 0.0
    %338 = vmatpush1.xpose.msra.mxu0 %v294
    %339 = vmatprep.subr.mxu0 0.0
    %340 = vmatpush1.xpose.msra.mxu0 %v297
    %341 = vmatprep.subr.mxu0 0.0
    %342 = vmatpush1.xpose.msra.mxu0 %v300
    %343 = vmatprep.subr.mxu0 0.0
    %344 = vmatpush1.xpose.msra.mxu0 %v303
    %345 = vmatprep.subr.mxu0 0.0
    %346 = vmatpush1.xpose.msra.mxu0 %v306
    %347 = vmatprep.subr.mxu0 0.0
    %348 = vmatpush1.xpose.msra.mxu0 %v309
    %349 = vmatprep.subr.mxu0 0.0
    %350 = vmatpush1.xpose.msra.mxu0 %v312
    %351 = vmatprep.subr.mxu0 0.0
    %352 = vmatpush1.xpose.msra.mxu0 %v315
    %353 = vmatprep.subr.mxu0 0.0
    %354 = vmatpush1.xpose.msra.mxu0 %v318
    %355 = vmatprep.subr.mxu0 0.0
    %356 = vmatpush1.xpose.msra.mxu0 %v321
    %357 = vmatprep.subr.mxu0 0.0
    %358 = vmatpush1.xpose.msra.mxu0 %v324
    %359 = vmatprep.subr.mxu0 0.0
    %360 = vmatpush1.xpose.msra.mxu0 %v327
    %361 = vmatprep.subr.mxu0 0.0
    %362 = vmatpush1.xpose.msra.mxu0 0.0
    %363 = vmatprep.subr.mxu0 0.0
    %364 = vmatpush1.xpose.msra.mxu0 0.0
    %365 = vmatprep.subr.mxu0 0.0
    %366 = vmatpush1.xpose.msra.mxu0 0.0
    %367 = vmatprep.subr.mxu0 0.0
    %368 = vmatpush1.xpose.msra.mxu0 0.0
    %369 = vmatprep.subr.mxu0 0.0
    %370 = vmatpush1.xpose.msra.mxu0 0.0
    %371 = vmatprep.subr.mxu0 0.0
    %372 = vmatpush1.xpose.msra.mxu0 0.0
    %373 = vmatprep.subr.mxu0 0.0
    %374 = vmatpush1.xpose.msra.mxu0 0.0
    %375 = vmatprep.subr.mxu0 0.0
    %376 = vmatpush1.xpose.msra.mxu0 0.0
    %377 = vmatprep.subr.mxu0 0.0
    %378 = vmatpush1.xpose.msra.mxu0 0.0
    %379 = vmatprep.subr.mxu0 0.0
    %380 = vmatpush1.xpose.msra.mxu0 0.0
    %381 = vmatprep.subr.mxu0 0.0
    %382 = vmatpush1.xpose.msra.mxu0 0.0
    %383 = vmatprep.subr.mxu0 0.0
    %384 = vmatpush1.xpose.msra.mxu0 0.0
    %385 = vmatprep.subr.mxu0 0.0
    %386 = vmatpush1.xpose.msra.mxu0 0.0
    %387 = vmatprep.subr.mxu0 0.0
    %388 = vmatpush1.xpose.msra.mxu0 0.0
    %389 = vmatprep.subr.mxu0 0.0
    %390 = vmatpush1.xpose.msra.mxu0 0.0
    %391 = vmatprep.subr.mxu0 0.0
    %392 = vmatpush1.xpose.msra.mxu0 0.0
    %393 = vmatprep.mubr.f32.mxu0 0.0
    %394 = vmatmul.mubr.f32.gmra.mrb[0].mxu0 %v279
    %v395 = vpop.f32.mrb[0].mxu0
    %v396 = vadd.f32 %v275, %v395
    %v397 = vpop.f32.mrb[0].mxu0
    %398 = vdwg.mxu0
    %v399 = vmax.f32 %v396, 0.0
    %v400 = vld [vmem:[%s5] sm:$0x1]
    %v401 = vld [vmem:[#allocation2] sm:$0x1]
    %403 = vset.pattern.permute.xlu0 0
    %404 = vperm.xlu0 %403, %v401
    %v405 = vpop.permute.xlu0 %404
    %v407 = vlaneseq
    %v408 = vshrl.u32 %v407, 7
    %v409 = vsub.s32 0, %v408
    %v410 = vrot.slane %v405, %v409
    %vm411 = vcmask 64512
    %v413 = vsel %vm411, %v400, 0
    %415 = vmatprep.subr.mxu0 0.0
    %416 = vmatpush1.msra.mxu0 %v399
    %417 = vmatprep.subr.mxu0 0.0
    %418 = vmatpush1.msra.mxu0 0.0
    %419 = vmatprep.subr.mxu0 0.0
    %420 = vmatpush1.msra.mxu0 0.0
    %421 = vmatprep.subr.mxu0 0.0
    %422 = vmatpush1.msra.mxu0 0.0
    %423 = vmatprep.subr.mxu0 0.0
    %424 = vmatpush1.msra.mxu0 0.0
    %425 = vmatprep.subr.mxu0 0.0
    %426 = vmatpush1.msra.mxu0 0.0
    %427 = vmatprep.subr.mxu0 0.0
    %428 = vmatpush1.msra.mxu0 0.0
    %429 = vmatprep.subr.mxu0 0.0
    %430 = vmatpush1.msra.mxu0 0.0
    %431 = vmatprep.subr.mxu0 0.0
    %432 = vmatpush1.msra.mxu0 0.0
    %433 = vmatprep.subr.mxu0 0.0
    %434 = vmatpush1.msra.mxu0 0.0
    %435 = vmatprep.subr.mxu0 0.0
    %436 = vmatpush1.msra.mxu0 0.0
    %437 = vmatprep.subr.mxu0 0.0
    %438 = vmatpush1.msra.mxu0 0.0
    %439 = vmatprep.subr.mxu0 0.0
    %440 = vmatpush1.msra.mxu0 0.0
    %441 = vmatprep.subr.mxu0 0.0
    %442 = vmatpush1.msra.mxu0 0.0
    %443 = vmatprep.subr.mxu0 0.0
    %444 = vmatpush1.msra.mxu0 0.0
    %445 = vmatprep.subr.mxu0 0.0
    %446 = vmatpush1.msra.mxu0 0.0
    %447 = vmatprep.subr.mxu0 0.0
    %448 = vmatpush1.msra.mxu0 0.0
    %449 = vmatprep.subr.mxu0 0.0
    %450 = vmatpush1.msra.mxu0 0.0
    %451 = vmatprep.subr.mxu0 0.0
    %452 = vmatpush1.msra.mxu0 0.0
    %453 = vmatprep.subr.mxu0 0.0
    %454 = vmatpush1.msra.mxu0 0.0
    %455 = vmatprep.subr.mxu0 0.0
    %456 = vmatpush1.msra.mxu0 0.0
    %457 = vmatprep.subr.mxu0 0.0
    %458 = vmatpush1.msra.mxu0 0.0
    %459 = vmatprep.subr.mxu0 0.0
    %460 = vmatpush1.msra.mxu0 0.0
    %461 = vmatprep.subr.mxu0 0.0
    %462 = vmatpush1.msra.mxu0 0.0
    %463 = vmatprep.subr.mxu0 0.0
    %464 = vmatpush1.msra.mxu0 0.0
    %465 = vmatprep.subr.mxu0 0.0
    %466 = vmatpush1.msra.mxu0 0.0
    %467 = vmatprep.subr.mxu0 0.0
    %468 = vmatpush1.msra.mxu0 0.0
    %469 = vmatprep.subr.mxu0 0.0
    %470 = vmatpush1.msra.mxu0 0.0
    %471 = vmatprep.subr.mxu0 0.0
    %472 = vmatpush1.msra.mxu0 0.0
    %473 = vmatprep.subr.mxu0 0.0
    %474 = vmatpush1.msra.mxu0 0.0
    %475 = vmatprep.subr.mxu0 0.0
    %476 = vmatpush1.msra.mxu0 0.0
    %477 = vmatprep.subr.mxu0 0.0
    %478 = vmatpush1.msra.mxu0 0.0
    %479 = vmatprep.mubr.f32.mxu0 0.0
    %480 = vmatmul.mubr.f32.gmra.mrb[0].mxu0 %v413
    %v481 = vpop.f32.mrb[0].mxu0
    %v482 = vadd.f32 %v410, %v481
    %v483 = vpop.f32.mrb[0].mxu0
    %484 = vdwg.mxu0
    %v485 = vxor.u32 %v482, 2147483648
    %v486 = vmul.f32 %v485, 1.442695
    %v487 = vpow.pop %v486
    %v488 = vadd.f32 %v487, 1.0
    %v489 = vrcp.pop %v488
    %v490 = vmul.f32 1.0, %v489
    %491 = vst [vmem:[#allocation3] sm:$0x1] %v490
    // Predicated region
    $region30: #{tpu_custom_call.1} parent=1 // pred_check
      _
    $region31: #{tpu_custom_call.1} parent=1 // pred_check_branch
      %493 = sbr.rel (0) target = $region33
    $region32: #{tpu_custom_call.1} parent=1 // pred_region
      %s495 = ssub.s32 16, 16
      %496 = vsyncadd [#allocation4], %s495
      %s498 = sshll.u32 [#allocation3], 4
      %s499 = int_to_ptr.vmem [resolvable:$true] %s498
      %501 = dma.vmem_to_hbm [thread:$0]  %s499, 16, %s7, [#allocation4]
    $region33: #{tpu_custom_call.1} parent=1 // pred_fallthru
      _
    // Predicated region
    $region34: #{tpu_custom_call.1} parent=1 // pred_check
      _
    $region35: #{tpu_custom_call.1} parent=1 // pred_check_branch
      %503 = sbr.rel (0) target = $region37
    $region36: #{tpu_custom_call.1} parent=1 // pred_region
      %504 = dma.done [#allocation4], 16
    $region37: #{tpu_custom_call.1} parent=1 // pred_fallthru
      _
    %505 = vsyncpa [#allocation4], 1

</llo_original>
